<compile_context>
chip_gen: v6e
topology: v6e:2x2x1
jax: 0.10.0
libtpu: 0.0.40
codegen_flags: <defaults>
</compile_context>

<pallas_src>
import functools

import jax
import jax.numpy as jnp
from jax.experimental import pallas as pl
from jax.experimental.pallas import tpu as pltpu

INPUT_BITS = 8
WEIGHT_BITS = 8
OUTPUT_BITS = 8


def _qrange(num_bits):
    return -(2 ** (num_bits - 1)), 2 ** (num_bits - 1) - 1


def _round_up(v, m):
    return ((v + m - 1) // m) * m


def _pick_tile(padded_size, max_tile):
    """Largest 128-multiple tile <= max_tile that divides padded_size (>=128 multiple)."""
    for cand in (1024, 512, 384, 256, 128):
        if cand <= max_tile and padded_size % cand == 0:
            return cand
    return 128


def _pad2(a, rows, cols, value=0.0):
    r, c = a.shape
    if r == rows and c == cols:
        return a
    return jnp.pad(a, ((0, rows - r), (0, cols - c)), constant_values=value)


# --------------------------- in-kernel quantization helpers ---------------------------

def _input_codes(x, s, num_bits):
    # Per-tensor symmetric codes; exact small integers -> exact in bf16.
    qmin, qmax = _qrange(num_bits)
    return jnp.clip(jnp.round(x / s), qmin, qmax).astype(jnp.bfloat16)


def _weight_centered_codes(w, s, zp, num_bits):
    # Per-output-channel codes with zero point, already centered:
    #   (clamp(round(w/s) + zp, qmin, qmax) - zp)  in [-(2^b - 1), 2^b - 1] -> exact in bf16.
    qmin, qmax = _qrange(num_bits)
    q = jnp.clip(jnp.round(w / s) + zp, qmin, qmax) - zp
    return q.astype(jnp.bfloat16)


def _epilogue(acc, s_in, ws, bias, s_out, num_bits, out_dtype):
    # Dequantize the integer accumulator (s_x * s_w[n] per column), add bias, then apply
    # the per-tensor output fake-quantizer.  Division kept for reference-exact rounding.
    qmin, qmax = _qrange(num_bits)
    out = acc * (s_in * ws) + bias
    q = jnp.clip(jnp.round(out / s_out), qmin, qmax)
    return (q * s_out).astype(out_dtype)


# -------------------------------------- kernels ---------------------------------------

def _fused_qmatmul_kernel(in_s_ref, out_s_ref, x_ref, w_ref, ws_ref, wzp_ref, b_ref,
                          o_ref, acc_ref):
    """Fully fused path: quantize x and W tiles in-kernel, code-domain bf16 MXU dot,
    f32 accumulate, bias + output fake-quant epilogue on the last K step."""
    k = pl.program_id(2)
    s_in = in_s_ref[0, 0]
    ws = ws_ref[...]

    xq = _input_codes(x_ref[...], s_in, INPUT_BITS)
    wq = _weight_centered_codes(w_ref[...], ws, wzp_ref[...], WEIGHT_BITS)
    prod = jnp.dot(xq, wq, preferred_element_type=jnp.float32)

    @pl.when(k == 0)
    def _():
        acc_ref[...] = prod          # first K step: write directly (no zero-init + add)

    @pl.when(k > 0)
    def _():
        acc_ref[...] += prod

    @pl.when(k == pl.num_programs(2) - 1)
    def _():
        o_ref[...] = _epilogue(acc_ref[...], s_in, ws, b_ref[...],
                               out_s_ref[0, 0], OUTPUT_BITS, o_ref.dtype)


def _codes_qmatmul_kernel(in_s_ref, out_s_ref, x_ref, wq_ref, ws_ref, b_ref,
                          o_ref, acc_ref):
    """Weight-code path: streams pre-quantized bf16 centered weight codes (2 B/elem),
    quantizes x in-kernel, code-domain dot, same epilogue."""
    k = pl.program_id(2)
    s_in = in_s_ref[0, 0]

    xq = _input_codes(x_ref[...], s_in, INPUT_BITS)
    prod = jnp.dot(xq, wq_ref[...], preferred_element_type=jnp.float32)

    @pl.when(k == 0)
    def _():
        acc_ref[...] = prod

    @pl.when(k > 0)
    def _():
        acc_ref[...] += prod

    @pl.when(k == pl.num_programs(2) - 1)
    def _():
        o_ref[...] = _epilogue(acc_ref[...], s_in, ws_ref[...], b_ref[...],
                               out_s_ref[0, 0], OUTPUT_BITS, o_ref.dtype)


def _weight_codes_kernel(w_ref, ws_ref, wzp_ref, o_ref):
    """One elementwise pass: f32 weight -> bf16 zero-point-centered integer codes."""
    o_ref[...] = _weight_centered_codes(w_ref[...], ws_ref[...], wzp_ref[...], WEIGHT_BITS)


# -------------------------------------- wrapper ---------------------------------------

@functools.partial(jax.jit,
                   static_argnames=("tm_max", "tn_max", "tk_max", "weight_codes"))
def quant_linear(x, weight, bias, input_scale, weight_scale, weight_zp, output_scale,
                 *, tm_max=256, tn_max=512, tk_max=512, weight_codes=None):
    """x: [M, K]; weight: [K, N] (= [in_features, out_features]); bias / weight_scale /
    weight_zp: [1, N] or [N]; input_scale / output_scale: scalar-shaped. Returns [M, N].
    weight_codes: True/False forces the weight-code prepass path; None = auto (>= 4 M-tiles)."""
    M, K = x.shape
    K2, N = weight.shape
    assert K == K2
    out_dtype = x.dtype

    x = x.astype(jnp.float32)
    weight = weight.astype(jnp.float32)
    bias = bias.reshape(1, N).astype(jnp.float32)          # TODO(synk): bias=None unsupported
    weight_scale = weight_scale.reshape(1, N).astype(jnp.float32)
    weight_zp = weight_zp.reshape(1, N).astype(jnp.float32)
    in_s = input_scale.reshape(1, 1).astype(jnp.float32)
    out_s = output_scale.reshape(1, 1).astype(jnp.float32)

    # Adaptive tiles: never pad M beyond the next multiple of 8 for small M; pick tk/tn so
    # 128-aligned K/N need no padding at all.
    tm = min(tm_max, _round_up(M, 8))
    Mp = _round_up(M, tm)
    Kp = _round_up(K, 128)
    Np = _round_up(N, 128)
    tk = _pick_tile(Kp, tk_max)
    tn = _pick_tile(Np, tn_max)

    # Zero padding is exact for these semantics: codes of 0 are 0 (padded weight-scale
    # columns set to 1 to avoid divide-by-zero); padded output rows/cols are sliced off.
    xp = _pad2(x, Mp, Kp)
    wp = _pad2(weight, Kp, Np)
    bp = _pad2(bias, 1, Np)
    wsp = _pad2(weight_scale, 1, Np, value=1.0)
    wzpp = _pad2(weight_zp, 1, Np)

    m_tiles, n_tiles, k_tiles = Mp // tm, Np // tn, Kp // tk
    use_codes = weight_codes if weight_codes is not None else (m_tiles >= 4)

    smem = pl.BlockSpec(memory_space=pltpu.MemorySpace.SMEM)
    mm_params = pltpu.CompilerParams(
        dimension_semantics=("parallel", "parallel", "arbitrary"))
    cost = pl.CostEstimate(
        flops=2 * Mp * Np * Kp, transcendentals=0,
        bytes_accessed=(4 * Mp * Kp * n_tiles
                        + (2 if use_codes else 4) * Kp * Np * m_tiles
                        + 4 * Mp * Np))

    if use_codes:
        wq = pl.pallas_call(
            _weight_codes_kernel,
            out_shape=jax.ShapeDtypeStruct((Kp, Np), jnp.bfloat16),
            grid=(k_tiles, n_tiles),
            in_specs=[pl.BlockSpec((tk, tn), lambda i, j: (i, j)),
                      pl.BlockSpec((1, tn), lambda i, j: (0, j)),
                      pl.BlockSpec((1, tn), lambda i, j: (0, j))],
            out_specs=pl.BlockSpec((tk, tn), lambda i, j: (i, j)),
            compiler_params=pltpu.CompilerParams(
                dimension_semantics=("parallel", "parallel")),
        )(wp, wsp, wzpp)

        out_p = pl.pallas_call(
            _codes_qmatmul_kernel,
            out_shape=jax.ShapeDtypeStruct((Mp, Np), out_dtype),
            grid=(m_tiles, n_tiles, k_tiles),
            in_specs=[smem, smem,
                      pl.BlockSpec((tm, tk), lambda i, j, k: (i, k)),   # raw x tile
                      pl.BlockSpec((tk, tn), lambda i, j, k: (k, j)),   # bf16 weight codes
                      pl.BlockSpec((1, tn), lambda i, j, k: (0, j)),    # per-channel scale
                      pl.BlockSpec((1, tn), lambda i, j, k: (0, j))],   # bias
            out_specs=pl.BlockSpec((tm, tn), lambda i, j, k: (i, j)),
            scratch_shapes=[pltpu.VMEM((tm, tn), jnp.float32)],
            compiler_params=mm_params,
            cost_estimate=cost,
        )(in_s, out_s, xp, wq, wsp, bp)
    else:
        out_p = pl.pallas_call(
            _fused_qmatmul_kernel,
            out_shape=jax.ShapeDtypeStruct((Mp, Np), out_dtype),
            grid=(m_tiles, n_tiles, k_tiles),
            in_specs=[smem, smem,
                      pl.BlockSpec((tm, tk), lambda i, j, k: (i, k)),   # raw x tile
                      pl.BlockSpec((tk, tn), lambda i, j, k: (k, j)),   # raw weight tile
                      pl.BlockSpec((1, tn), lambda i, j, k: (0, j)),    # per-channel scale
                      pl.BlockSpec((1, tn), lambda i, j, k: (0, j)),    # per-channel zp
                      pl.BlockSpec((1, tn), lambda i, j, k: (0, j))],   # bias
            out_specs=pl.BlockSpec((tm, tn), lambda i, j, k: (i, j)),
            scratch_shapes=[pltpu.VMEM((tm, tn), jnp.float32)],
            compiler_params=mm_params,
            cost_estimate=cost,
        )(in_s, out_s, xp, wp, wsp, wzpp, bp)

    if Mp == M and Np == N:
        return out_p
    return out_p[:M, :N]


# ------------------------------------- reference --------------------------------------

def _fake_quantize(v, scale, zero_point, num_bits):
    qmin, qmax = _qrange(num_bits)
    q = jnp.round(v / scale) + zero_point
    q = jnp.clip(q, qmin, qmax)
    return (q - zero_point) * scale


def _reference(x, weight, bias, input_scale, weight_scale, weight_zp, output_scale):
    x_fq = _fake_quantize(x, input_scale[0, 0], 0.0, INPUT_BITS)
    w_fq = _fake_quantize(weight, weight_scale, weight_zp, WEIGHT_BITS)
    out = jnp.dot(x_fq, w_fq, preferred_element_type=jnp.float32) + bias
    return _fake_quantize(out, output_scale[0, 0], 0.0, OUTPUT_BITS)


if __name__ == "__main__":
    root = jax.random.PRNGKey(0)

    def make_case(key, M, K, N):
        kx, kw, kb = jax.random.split(key, 3)
        x = jax.random.normal(kx, (M, K), dtype=jnp.float32)
        w = jax.random.normal(kw, (K, N), dtype=jnp.float32) * 0.1   # [in, out]
        b = jax.random.normal(kb, (1, N), dtype=jnp.float32) * 0.01
        qmax = 2 ** (INPUT_BITS - 1) - 1
        in_s = (jnp.max(jnp.abs(x)) / qmax).reshape(1, 1).astype(jnp.float32)
        ws = (jnp.max(jnp.abs(w), axis=0, keepdims=True) / qmax).astype(jnp.float32)
        wzp = jnp.zeros((1, N), dtype=jnp.float32)
        out_est = x @ w + b
        out_s = (jnp.max(jnp.abs(out_est)) / qmax).reshape(1, 1).astype(jnp.float32)
        return (x, w, b, in_s, ws, wzp, out_s)

    def check(args, **kwargs):
        out = jax.block_until_ready(quant_linear(*args, **kwargs))
        ref = _reference(*args)
        assert out.shape == ref.shape
        # Integer-code products are exact; differences vs. the dequantize-first f32
        # reference come only from f32 accumulation / scale-application order and are
        # bounded by one output quantization step (and only at round-to-nearest ties).
        step = float(args[-1][0, 0])
        err = jnp.abs(out - ref.astype(out.dtype))
        assert float(jnp.max(err)) <= step * 1.001 + 1e-6, "mismatch vs. reference"
        frac_off = float(jnp.mean((err > 0.5 * step).astype(jnp.float32)))
        assert frac_off <= 0.01, f"too many quantization-tie flips vs. reference: {frac_off}"

    k1, k2 = jax.random.split(root, 2)

    # 1) Small, ragged (non-tile-multiple) decode-like shape -> fully fused path (tm=16).
    case1 = make_case(k1, 12, 40, 48)   # tokens, in_features, out_features
    check(case1)

    # 2) Aligned shape with a 2-step K reduction; exercise both the fused path and the
    #    weight-code prepass path on the same inputs.
    case2 = make_case(k2, 256, 1024, 256)
    check(case2, weight_codes=False)
    check(case2, weight_codes=True)

    print("KERNEL_OK")
</pallas_src>

<mosaic_0001>
module attributes {stable_mosaic.version = 11 : i64} {
  func.func @_fused_qmatmul_kernel(%arg0: i32, %arg1: i32, %arg2: i32, %arg3: memref<1x1xf32, #tpu.memory_space<smem>>, %arg4: memref<1x1xf32, #tpu.memory_space<smem>>, %arg5: memref<16x128xf32, #tpu.memory_space<vmem>>, %arg6: memref<128x128xf32, #tpu.memory_space<vmem>>, %arg7: memref<1x128xf32, #tpu.memory_space<vmem>>, %arg8: memref<1x128xf32, #tpu.memory_space<vmem>>, %arg9: memref<1x128xf32, #tpu.memory_space<vmem>>, %arg10: memref<16x128xf32, #tpu.memory_space<vmem>>, %arg11: memref<16x128xf32, #tpu.memory_space<vmem>>) attributes {dimension_semantics = [#tpu.dimension_semantics<parallel>, #tpu.dimension_semantics<parallel>, #tpu.dimension_semantics<arbitrary>], iteration_bounds = array<i64: 1, 1, 1>, scalar_prefetch = 0 : i64, scratch_operands = 1 : i64, tpu.core_type = #tpu.core_type<tc>, window_params = [{transform_indices = @transform_0, window_bounds = array<i64: 1, 1>}, {transform_indices = @transform_1, window_bounds = array<i64: 1, 1>}, {transform_indices = @transform_2, window_bounds = array<i64: 16, 128>}, {transform_indices = @transform_3, window_bounds = array<i64: 128, 128>}, {transform_indices = @transform_4, window_bounds = array<i64: 1, 128>}, {transform_indices = @transform_5, window_bounds = array<i64: 1, 128>}, {transform_indices = @transform_6, window_bounds = array<i64: 1, 128>}, {transform_indices = @transform_7, window_bounds = array<i64: 16, 128>}]} {
    %c0 = arith.constant 0 : index
    %c0_0 = arith.constant 0 : index
    %0 = memref.load %arg3[%c0, %c0_0] : memref<1x1xf32, #tpu.memory_space<smem>>
    %c0_1 = arith.constant 0 : index
    %c0_2 = arith.constant 0 : index
    %1 = vector.load %arg7[%c0_1, %c0_2] : memref<1x128xf32, #tpu.memory_space<vmem>>, vector<1x128xf32>
    %c0_3 = arith.constant 0 : index
    %c0_4 = arith.constant 0 : index
    %2 = vector.load %arg5[%c0_3, %c0_4] : memref<16x128xf32, #tpu.memory_space<vmem>>, vector<16x128xf32>
    %3 = vector.broadcast %0 : f32 to vector<16x128xf32>
    %4 = arith.divf %2, %3 : vector<16x128xf32>
    %5 = math.roundeven %4 : vector<16x128xf32>
    %c-128_i32 = arith.constant -128 : i32
    %c127_i32 = arith.constant 127 : i32
    %6 = arith.sitofp %c-128_i32 : i32 to f32
    %7 = vector.broadcast %6 : f32 to vector<16x128xf32>
    %8 = arith.maximumf %7, %5 : vector<16x128xf32>
    %9 = arith.sitofp %c127_i32 : i32 to f32
    %10 = vector.broadcast %9 : f32 to vector<16x128xf32>
    %11 = arith.minimumf %10, %8 : vector<16x128xf32>
    %12 = arith.truncf %11 : vector<16x128xf32> to vector<16x128xbf16>
    %c0_5 = arith.constant 0 : index
    %c0_6 = arith.constant 0 : index
    %13 = vector.load %arg6[%c0_5, %c0_6] : memref<128x128xf32, #tpu.memory_space<vmem>>, vector<128x128xf32>
    %c0_7 = arith.constant 0 : index
    %c0_8 = arith.constant 0 : index
    %14 = vector.load %arg8[%c0_7, %c0_8] : memref<1x128xf32, #tpu.memory_space<vmem>>, vector<1x128xf32>
    %15 = vector.broadcast %1 : vector<1x128xf32> to vector<128x128xf32>
    %16 = arith.divf %13, %15 : vector<128x128xf32>
    %17 = math.roundeven %16 : vector<128x128xf32>
    %18 = vector.broadcast %14 : vector<1x128xf32> to vector<128x128xf32>
    %19 = arith.addf %17, %18 : vector<128x128xf32>
    %c-128_i32_9 = arith.constant -128 : i32
    %c127_i32_10 = arith.constant 127 : i32
    %20 = arith.sitofp %c-128_i32_9 : i32 to f32
    %21 = vector.broadcast %20 : f32 to vector<128x128xf32>
    %22 = arith.maximumf %21, %19 : vector<128x128xf32>
    %23 = arith.sitofp %c127_i32_10 : i32 to f32
    %24 = vector.broadcast %23 : f32 to vector<128x128xf32>
    %25 = arith.minimumf %24, %22 : vector<128x128xf32>
    %26 = vector.broadcast %14 : vector<1x128xf32> to vector<128x128xf32>
    %27 = arith.subf %25, %26 : vector<128x128xf32>
    %28 = arith.truncf %27 : vector<128x128xf32> to vector<128x128xbf16>
    %cst = arith.constant dense<0.000000e+00> : vector<16x128xf32>
    %29 = tpu.matmul %12, %28, %cst {dimension_numbers = #tpu.dot_dimension_numbers<[1], [0], [0], [1], [0, 0, 1, 1], [], []>} : vector<16x128xbf16>, vector<128x128xbf16>, vector<16x128xf32> -> vector<16x128xf32>
    %c0_i32 = arith.constant 0 : i32
    %30 = arith.cmpi eq, %arg2, %c0_i32 : i32
    %31 = arith.extui %30 : i1 to i32
    %c0_i32_11 = arith.constant 0 : i32
    %32 = arith.cmpi ne, %31, %c0_i32_11 : i32
    scf.if %32 {
      %c0_16 = arith.constant 0 : index
      %c0_17 = arith.constant 0 : index
      %39 = vector.load %arg11[%c0_16, %c0_17] : memref<16x128xf32, #tpu.memory_space<vmem>>, vector<16x128xf32>
      tpu.vector_store %arg11[%c0_16, %c0_17], %29 {strides = array<i32>} : memref<16x128xf32, #tpu.memory_space<vmem>>, vector<16x128xf32>,
    } else {
    }
    %c0_i32_12 = arith.constant 0 : i32
    %33 = arith.cmpi sgt, %arg2, %c0_i32_12 : i32
    %34 = arith.extui %33 : i1 to i32
    %c0_i32_13 = arith.constant 0 : i32
    %35 = arith.cmpi ne, %34, %c0_i32_13 : i32
    scf.if %35 {
      %c0_16 = arith.constant 0 : index
      %c0_17 = arith.constant 0 : index
      %39 = vector.load %arg11[%c0_16, %c0_17] : memref<16x128xf32, #tpu.memory_space<vmem>>, vector<16x128xf32>
      %40 = arith.addf %39, %29 : vector<16x128xf32>
      %c0_18 = arith.constant 0 : index
      %c0_19 = arith.constant 0 : index
      %41 = vector.load %arg11[%c0_18, %c0_19] : memref<16x128xf32, #tpu.memory_space<vmem>>, vector<16x128xf32>
      tpu.vector_store %arg11[%c0_18, %c0_19], %40 {strides = array<i32>} : memref<16x128xf32, #tpu.memory_space<vmem>>, vector<16x128xf32>,
    } else {
    }
    %c0_i32_14 = arith.constant 0 : i32
    %36 = arith.cmpi eq, %arg2, %c0_i32_14 : i32
    %37 = arith.extui %36 : i1 to i32
    %c0_i32_15 = arith.constant 0 : i32
    %38 = arith.cmpi ne, %37, %c0_i32_15 : i32
    scf.if %38 {
      %c0_16 = arith.constant 0 : index
      %c0_17 = arith.constant 0 : index
      %39 = vector.load %arg11[%c0_16, %c0_17] : memref<16x128xf32, #tpu.memory_space<vmem>>, vector<16x128xf32>
      %c0_18 = arith.constant 0 : index
      %c0_19 = arith.constant 0 : index
      %40 = vector.load %arg9[%c0_18, %c0_19] : memref<1x128xf32, #tpu.memory_space<vmem>>, vector<1x128xf32>
      %c0_20 = arith.constant 0 : index
      %c0_21 = arith.constant 0 : index
      %41 = memref.load %arg4[%c0_20, %c0_21] : memref<1x1xf32, #tpu.memory_space<smem>>
      %42 = vector.broadcast %0 : f32 to vector<1x128xf32>
      %43 = arith.mulf %42, %1 : vector<1x128xf32>
      %44 = vector.broadcast %43 : vector<1x128xf32> to vector<16x128xf32>
      %45 = arith.mulf %39, %44 : vector<16x128xf32>
      %46 = vector.broadcast %40 : vector<1x128xf32> to vector<16x128xf32>
      %47 = arith.addf %45, %46 : vector<16x128xf32>
      %48 = vector.broadcast %41 : f32 to vector<16x128xf32>
      %49 = arith.divf %47, %48 : vector<16x128xf32>
      %50 = math.roundeven %49 : vector<16x128xf32>
      %c-128_i32_22 = arith.constant -128 : i32
      %c127_i32_23 = arith.constant 127 : i32
      %51 = arith.sitofp %c-128_i32_22 : i32 to f32
      %52 = vector.broadcast %51 : f32 to vector<16x128xf32>
      %53 = arith.maximumf %52, %50 : vector<16x128xf32>
      %54 = arith.sitofp %c127_i32_23 : i32 to f32
      %55 = vector.broadcast %54 : f32 to vector<16x128xf32>
      %56 = arith.minimumf %55, %53 : vector<16x128xf32>
      %57 = vector.broadcast %41 : f32 to vector<16x128xf32>
      %58 = arith.mulf %56, %57 : vector<16x128xf32>
      %c0_24 = arith.constant 0 : index
      %c0_25 = arith.constant 0 : index
      %59 = vector.load %arg10[%c0_24, %c0_25] : memref<16x128xf32, #tpu.memory_space<vmem>>, vector<16x128xf32>
      tpu.vector_store %arg10[%c0_24, %c0_25], %58 {strides = array<i32>} : memref<16x128xf32, #tpu.memory_space<vmem>>, vector<16x128xf32>,
    } else {
    }
    return
  }
  func.func @transform_0(%arg0: i32, %arg1: i32, %arg2: i32) -> (i32, i32) {
    %c0_i32 = arith.constant 0 : i32
    %c0_i32_0 = arith.constant 0 : i32
    %c0_i32_1 = arith.constant 0 : i32
    return %c0_i32, %c0_i32_0 : i32, i32
  }
  func.func @transform_1(%arg0: i32, %arg1: i32, %arg2: i32) -> (i32, i32) {
    %c0_i32 = arith.constant 0 : i32
    %c0_i32_0 = arith.constant 0 : i32
    %c0_i32_1 = arith.constant 0 : i32
    return %c0_i32, %c0_i32_0 : i32, i32
  }
  func.func @transform_2(%arg0: i32, %arg1: i32, %arg2: i32) -> (i32, i32) {
    %c0_i32 = arith.constant 0 : i32
    return %arg0, %arg2 : i32, i32
  }
  func.func @transform_3(%arg0: i32, %arg1: i32, %arg2: i32) -> (i32, i32) {
    %c0_i32 = arith.constant 0 : i32
    return %arg2, %arg1 : i32, i32
  }
  func.func @transform_4(%arg0: i32, %arg1: i32, %arg2: i32) -> (i32, i32) {
    %c0_i32 = arith.constant 0 : i32
    %c0_i32_0 = arith.constant 0 : i32
    return %c0_i32, %arg1 : i32, i32
  }
  func.func @transform_5(%arg0: i32, %arg1: i32, %arg2: i32) -> (i32, i32) {
    %c0_i32 = arith.constant 0 : i32
    %c0_i32_0 = arith.constant 0 : i32
    return %c0_i32, %arg1 : i32, i32
  }
  func.func @transform_6(%arg0: i32, %arg1: i32, %arg2: i32) -> (i32, i32) {
    %c0_i32 = arith.constant 0 : i32
    %c0_i32_0 = arith.constant 0 : i32
    return %c0_i32, %arg1 : i32, i32
  }
  func.func @transform_7(%arg0: i32, %arg1: i32, %arg2: i32) -> (i32, i32) {
    %c0_i32 = arith.constant 0 : i32
    return %arg0, %arg1 : i32, i32
  }
}

</mosaic_0001>

<llo_original>
// kernel: quant_linear.1
$region0: #{quant_linear.1}
  #allocation0 [shape = 'u32[]', space=smem, size = 0x4, offset = 0x4, fixed_abs, tag = 'smem constant byte address 0x4 - core index']
  #allocation1 [shape = 'u32[144,128]{1,0:T(1,128)}', space=vmem, size = 0x12000, scoped, tag = 'internal scratch']
  #allocation2 [shape = 'f32[16,128]{1,0:T(8,128)}', space=vmem, size = 0x2000, scoped, tag = 'scratch operand']
  #allocation3 [shape = 'f32[1,1]{1,0:T(1,128)S(6)}', space=smem, size = 0x200, scoped, tag = 'scoped memory for quant_linear.1']
  #allocation4 [shape = 'f32[1,1]{1,0:T(1,128)S(6)}', space=smem, size = 0x200, scoped, tag = 'scoped memory for quant_linear.1']
  %s0 = inlined_call_operand.<no memory space> [shape: f32[1,1], index: 0, kind: input, shape index: {}]
  %s1 = inlined_call_operand.<no memory space> [shape: f32[1,1], index: 1, kind: input, shape index: {}]
  %s2 = inlined_call_operand.vmem [shape: f32[16,128], index: 2, kind: input, shape index: {}]
  %s3 = inlined_call_operand.vmem [shape: f32[128,128], index: 3, kind: input, shape index: {}]
  %s4 = inlined_call_operand.vmem [shape: f32[1,128], index: 4, kind: input, shape index: {}]
  %s5 = inlined_call_operand.vmem [shape: f32[1,128], index: 5, kind: input, shape index: {}]
  %s6 = inlined_call_operand.vmem [shape: f32[1,128], index: 6, kind: input, shape index: {}]
  %s7 = inlined_call_operand.hbm [shape: f32[16,128], index: 7, kind: output, shape index: {}]
  %s8 = sld [smem:[#allocation0]]
  $region50: #{quant_linear.1} parent=0
    _
  %s10 = ssub.s32 1, %s8
  %s11 = scalar_select 0, %s10, %s8
  %12 = sst [smem:[#allocation3]] %s0
  %13 = sst [smem:[#allocation4]] %s1
  $region1: #{quant_linear.1} parent=0
    #allocation5 [shape = 'u8[8192]{0}', space=vmem, size = 0x2000, scoped, tag = 'output window, operand 0, single buffered']
    #allocation6 [shape = 's32[1]{0}', space=sflag, size = 0x4, scoped, tag = 'scoped memory for quant_linear.1']
    %14 = vsyncpa [#allocation6], 0
    // Predicated region
    $region2: #{quant_linear.1} parent=1 // pred_check
      _
    $region3: #{quant_linear.1} parent=1 // pred_check_branch
      %16 = sbr.rel (0) target = $region5
    $region4: #{quant_linear.1} parent=1 // pred_region
      _
    $region5: #{quant_linear.1} parent=1 // pred_fallthru
      _
    // Predicated region
    $region6: #{quant_linear.1} parent=1 // pred_check
      _
    $region7: #{quant_linear.1} parent=1 // pred_check_branch
      %18 = sbr.rel (0) target = $region9
    $region8: #{quant_linear.1} parent=1 // pred_region
      _
    $region9: #{quant_linear.1} parent=1 // pred_fallthru
      _
    // Predicated region
    $region10: #{quant_linear.1} parent=1 // pred_check
      _
    $region11: #{quant_linear.1} parent=1 // pred_check_branch
      %20 = sbr.rel (0) target = $region13
    $region12: #{quant_linear.1} parent=1 // pred_region
      _
    $region13: #{quant_linear.1} parent=1 // pred_fallthru
      _
    // Predicated region
    $region14: #{quant_linear.1} parent=1 // pred_check
      _
    $region15: #{quant_linear.1} parent=1 // pred_check_branch
      %22 = sbr.rel (0) target = $region17
    $region16: #{quant_linear.1} parent=1 // pred_region
      _
    $region17: #{quant_linear.1} parent=1 // pred_fallthru
      _
    // Predicated region
    $region18: #{quant_linear.1} parent=1 // pred_check
      _
    $region19: #{quant_linear.1} parent=1 // pred_check_branch
      %24 = sbr.rel (0) target = $region21
    $region20: #{quant_linear.1} parent=1 // pred_region
      _
    $region21: #{quant_linear.1} parent=1 // pred_fallthru
      _
    // Predicated region
    $region22: #{quant_linear.1} parent=1 // pred_check
      _
    $region23: #{quant_linear.1} parent=1 // pred_check_branch
      %26 = sbr.rel (0) target = $region25
    $region24: #{quant_linear.1} parent=1 // pred_region
      _
    $region25: #{quant_linear.1} parent=1 // pred_fallthru
      _
    // Predicated region
    $region26: #{quant_linear.1} parent=1 // pred_check
      _
    $region27: #{quant_linear.1} parent=1 // pred_check_branch
      %28 = sbr.rel (0) target = $region29
    $region28: #{quant_linear.1} parent=1 // pred_region
      _
    $region29: #{quant_linear.1} parent=1 // pred_fallthru
      _
    %s30 = sld [smem:[#allocation3]]
    %v31 = vld [vmem:[%s4] sm:$0x1]
    %v32 = vld [vmem:[%s2] sm:$0xff]
    %v33 = vld [vmem:[%s2 + $0x8] sm:$0xff]
    %v34 = vstv %s30
    %v35 = vrcp.pop %v34
    %v36 = vmul.f32 %v32, %v35
    %v37 = vmul.f32 %v33, %v35
    %v38 = vround.ne.pseudo %v36
    %v39 = vround.ne.pseudo %v37
    %v40 = vmax.f32 %v38, -128.0
    %v41 = vmax.f32 %v39, -128.0
    %v42 = vmin.f32 %v40, 127.0
    %v43 = vmin.f32 %v41, 127.0
    %v44 = vpack.c.bf16 %v43, %v42
    %v45 = vld [vmem:[%s3] sm:$0xff]
    %v46 = vld [vmem:[%s3 + $0x8] sm:$0xff]
    %v47 = vld [vmem:[%s3 + $0x10] sm:$0xff]
    %v48 = vld [vmem:[%s3 + $0x18] sm:$0xff]
    %v49 = vld [vmem:[%s3 + $0x20] sm:$0xff]
    %v50 = vld [vmem:[%s3 + $0x28] sm:$0xff]
    %v51 = vld [vmem:[%s3 + $0x30] sm:$0xff]
    %v52 = vld [vmem:[%s3 + $0x38] sm:$0xff]
    %v53 = vld [vmem:[%s3 + $0x40] sm:$0xff]
    %v54 = vld [vmem:[%s3 + $0x48] sm:$0xff]
    %v55 = vld [vmem:[%s3 + $0x50] sm:$0xff]
    %v56 = vld [vmem:[%s3 + $0x58] sm:$0xff]
    %v57 = vld [vmem:[%s3 + $0x60] sm:$0xff]
    %v58 = vld [vmem:[%s3 + $0x68] sm:$0xff]
    %v59 = vld [vmem:[%s3 + $0x70] sm:$0xff]
    %v60 = vld [vmem:[%s3 + $0x78] sm:$0xff]
    %v61 = vld [vmem:[%s5] sm:$0x1]
    %v63 = vlaneseq
    %v64 = vshrl.u32 %v63, 7
    %v65 = vsub.s32 0, %v64
    %v66 = vrot.slane %v31, %v65
    %v68 = vrcp.pop %v66
    %v69 = vmul.f32 %v45, %v68
    %v70 = vmul.f32 %v46, %v68
    %v71 = vmul.f32 %v47, %v68
    %v72 = vmul.f32 %v48, %v68
    %v73 = vmul.f32 %v49, %v68
    %v74 = vmul.f32 %v50, %v68
    %v75 = vmul.f32 %v51, %v68
    %v76 = vmul.f32 %v52, %v68
    %v77 = vmul.f32 %v53, %v68
    %v78 = vmul.f32 %v54, %v68
    %v79 = vmul.f32 %v55, %v68
    %v80 = vmul.f32 %v56, %v68
    %v81 = vmul.f32 %v57, %v68
    %v82 = vmul.f32 %v58, %v68
    %v83 = vmul.f32 %v59, %v68
    %v84 = vmul.f32 %v60, %v68
    %v85 = vround.ne.pseudo %v69
    %v86 = vround.ne.pseudo %v70
    %v87 = vround.ne.pseudo %v71
    %v88 = vround.ne.pseudo %v72
    %v89 = vround.ne.pseudo %v73
    %v90 = vround.ne.pseudo %v74
    %v91 = vround.ne.pseudo %v75
    %v92 = vround.ne.pseudo %v76
    %v93 = vround.ne.pseudo %v77
    %v94 = vround.ne.pseudo %v78
    %v95 = vround.ne.pseudo %v79
    %v96 = vround.ne.pseudo %v80
    %v97 = vround.ne.pseudo %v81
    %v98 = vround.ne.pseudo %v82
    %v99 = vround.ne.pseudo %v83
    %v100 = vround.ne.pseudo %v84
    %v102 = vlaneseq
    %v103 = vshrl.u32 %v102, 7
    %v104 = vsub.s32 0, %v103
    %v105 = vrot.slane %v61, %v104
    %v107 = vadd.f32 %v85, %v105
    %v108 = vadd.f32 %v86, %v105
    %v109 = vadd.f32 %v87, %v105
    %v110 = vadd.f32 %v88, %v105
    %v111 = vadd.f32 %v89, %v105
    %v112 = vadd.f32 %v90, %v105
    %v113 = vadd.f32 %v91, %v105
    %v114 = vadd.f32 %v92, %v105
    %v115 = vadd.f32 %v93, %v105
    %v116 = vadd.f32 %v94, %v105
    %v117 = vadd.f32 %v95, %v105
    %v118 = vadd.f32 %v96, %v105
    %v119 = vadd.f32 %v97, %v105
    %v120 = vadd.f32 %v98, %v105
    %v121 = vadd.f32 %v99, %v105
    %v122 = vadd.f32 %v100, %v105
    %v123 = vmax.f32 %v107, -128.0
    %v124 = vmax.f32 %v108, -128.0
    %v125 = vmax.f32 %v109, -128.0
    %v126 = vmax.f32 %v110, -128.0
    %v127 = vmax.f32 %v111, -128.0
    %v128 = vmax.f32 %v112, -128.0
    %v129 = vmax.f32 %v113, -128.0
    %v130 = vmax.f32 %v114, -128.0
    %v131 = vmax.f32 %v115, -128.0
    %v132 = vmax.f32 %v116, -128.0
    %v133 = vmax.f32 %v117, -128.0
    %v134 = vmax.f32 %v118, -128.0
    %v135 = vmax.f32 %v119, -128.0
    %v136 = vmax.f32 %v120, -128.0
    %v137 = vmax.f32 %v121, -128.0
    %v138 = vmax.f32 %v122, -128.0
    %v139 = vmin.f32 %v123, 127.0
    %v140 = vmin.f32 %v124, 127.0
    %v141 = vmin.f32 %v125, 127.0
    %v142 = vmin.f32 %v126, 127.0
    %v143 = vmin.f32 %v127, 127.0
    %v144 = vmin.f32 %v128, 127.0
    %v145 = vmin.f32 %v129, 127.0
    %v146 = vmin.f32 %v130, 127.0
    %v147 = vmin.f32 %v131, 127.0
    %v148 = vmin.f32 %v132, 127.0
    %v149 = vmin.f32 %v133, 127.0
    %v150 = vmin.f32 %v134, 127.0
    %v151 = vmin.f32 %v135, 127.0
    %v152 = vmin.f32 %v136, 127.0
    %v153 = vmin.f32 %v137, 127.0
    %v154 = vmin.f32 %v138, 127.0
    %v155 = vsub.f32 %v139, %v105
    %v156 = vsub.f32 %v140, %v105
    %v157 = vsub.f32 %v141, %v105
    %v158 = vsub.f32 %v142, %v105
    %v159 = vsub.f32 %v143, %v105
    %v160 = vsub.f32 %v144, %v105
    %v161 = vsub.f32 %v145, %v105
    %v162 = vsub.f32 %v146, %v105
    %v163 = vsub.f32 %v147, %v105
    %v164 = vsub.f32 %v148, %v105
    %v165 = vsub.f32 %v149, %v105
    %v166 = vsub.f32 %v150, %v105
    %v167 = vsub.f32 %v151, %v105
    %v168 = vsub.f32 %v152, %v105
    %v169 = vsub.f32 %v153, %v105
    %v170 = vsub.f32 %v154, %v105
    %v171 = vpack.c.bf16 %v156, %v155
    %v172 = vpack.c.bf16 %v158, %v157
    %v173 = vpack.c.bf16 %v160, %v159
    %v174 = vpack.c.bf16 %v162, %v161
    %v175 = vpack.c.bf16 %v164, %v163
    %v176 = vpack.c.bf16 %v166, %v165
    %v177 = vpack.c.bf16 %v168, %v167
    %v178 = vpack.c.bf16 %v170, %v169
    %179 = vmatprep.subr.bf16.mxu0 0
    %180 = vmatpush1.bf16.msra.mxu0 %v178
    %181 = vmatprep.subr.bf16.mxu0 0
    %182 = vmatpush1.bf16.msra.mxu0 %v177
    %183 = vmatprep.subr.bf16.mxu0 0
    %184 = vmatpush1.bf16.msra.mxu0 %v176
    %185 = vmatprep.subr.bf16.mxu0 0
    %186 = vmatpush1.bf16.msra.mxu0 %v175
    %187 = vmatprep.subr.bf16.mxu0 0
    %188 = vmatpush1.bf16.msra.mxu0 %v174
    %189 = vmatprep.subr.bf16.mxu0 0
    %190 = vmatpush1.bf16.msra.mxu0 %v173
    %191 = vmatprep.subr.bf16.mxu0 0
    %192 = vmatpush1.bf16.msra.mxu0 %v172
    %193 = vmatprep.subr.bf16.mxu0 0
    %194 = vmatpush1.bf16.msra.mxu0 %v171
    %195 = vmatprep.subr.bf16.mxu0 0
    %196 = vmatpush2.bf16.msra.mxu0 0
    %197 = vmatprep.subr.bf16.mxu0 0
    %198 = vmatpush2.bf16.msra.mxu0 0
    %199 = vmatprep.subr.bf16.mxu0 0
    %200 = vmatpush2.bf16.msra.mxu0 0
    %201 = vmatprep.subr.bf16.mxu0 0
    %202 = vmatpush2.bf16.msra.mxu0 0
    %203 = vmatprep.subr.bf16.mxu0 0
    %204 = vmatpush2.bf16.msra.mxu0 0
    %205 = vmatprep.subr.bf16.mxu0 0
    %206 = vmatpush2.bf16.msra.mxu0 0
    %207 = vmatprep.subr.bf16.mxu0 0
    %208 = vmatpush2.bf16.msra.mxu0 0
    %209 = vmatprep.subr.bf16.mxu0 0
    %210 = vmatpush2.bf16.msra.mxu0 0
    %211 = vmatprep.mubr.bf16.mxu0 0
    %212 = vmatmul.mubr.bf16.gmra.mxu0 %v44
    %v213 = vpop.f32.mrf.mxu0
    %v214 = vadd.f32 0.0, %v213
    %v215 = vpop.f32.mrf.mxu0
    %v216 = vpop.f32.mrf.mxu0
    %v217 = vadd.f32 0.0, %v216
    %v218 = vpop.f32.mrf.mxu0
    %219 = vdwg.mxu0
    %p220 = scmp.eq.s32.totalorder 0, 0
    // Predicated region
    $region30: #{quant_linear.1} parent=1 // pred_check
      %p221 = pneg %p220
    $region31: #{quant_linear.1} parent=1 // pred_check_branch
      %223 = sbr.rel (%p221) target = $region33
    $region32: #{quant_linear.1} parent=1 // pred_region
      %224 = vst [vmem:[#allocation2] sm:$0xff] %v214
      %225 = vst [vmem:[#allocation2 + $0x8] sm:$0xff] %v217
    $region33: #{quant_linear.1} parent=1 // pred_fallthru
      _
    %p226 = scmp.gt.s32.totalorder 0, 0
    // Predicated region
    $region34: #{quant_linear.1} parent=1 // pred_check
      %p227 = pneg %p226
    $region35: #{quant_linear.1} parent=1 // pred_check_branch
      %229 = sbr.rel (%p227) target = $region37
    $region36: #{quant_linear.1} parent=1 // pred_region
      %v230 = vld [vmem:[#allocation2] sm:$0xff]
      %v231 = vld [vmem:[#allocation2 + $0x8] sm:$0xff]
      %v232 = vadd.f32 %v230, %v214
      %v233 = vadd.f32 %v231, %v217
      %234 = vst [vmem:[#allocation2] sm:$0xff] %v232
      %235 = vst [vmem:[#allocation2 + $0x8] sm:$0xff] %v233
    $region37: #{quant_linear.1} parent=1 // pred_fallthru
      _
    // Predicated region
    $region38: #{quant_linear.1} parent=1 // pred_check
      %p236 = pneg %p220
    $region39: #{quant_linear.1} parent=1 // pred_check_branch
      %238 = sbr.rel (%p236) target = $region41
    $region40: #{quant_linear.1} parent=1 // pred_region
      %v239 = vld [vmem:[#allocation2] sm:$0xff]
      %v240 = vld [vmem:[#allocation2 + $0x8] sm:$0xff]
      %v241 = vld [vmem:[%s6] sm:$0x1]
      %s242 = sld [smem:[#allocation4]]
      %v243 = vmul.f32 %v34, %v31
      %v245 = vlaneseq
      %v246 = vshrl.u32 %v245, 7
      %v247 = vsub.s32 0, %v246
      %v248 = vrot.slane %v243, %v247
      %v250 = vmul.f32 %v239, %v248
      %v251 = vmul.f32 %v240, %v248
      %v253 = vlaneseq
      %v254 = vshrl.u32 %v253, 7
      %v255 = vsub.s32 0, %v254
      %v256 = vrot.slane %v241, %v255
      %v258 = vadd.f32 %v250, %v256
      %v259 = vadd.f32 %v251, %v256
      %v260 = vstv %s242
      %v261 = vrcp.pop %v260
      %v262 = vmul.f32 %v258, %v261
      %v263 = vmul.f32 %v259, %v261
      %v264 = vround.ne.pseudo %v262
      %v265 = vround.ne.pseudo %v263
      %v266 = vmax.f32 %v264, -128.0
      %v267 = vmax.f32 %v265, -128.0
      %v268 = vmin.f32 %v266, 127.0
      %v269 = vmin.f32 %v267, 127.0
      %v270 = vmul.f32 %v268, %v260
      %v271 = vmul.f32 %v269, %v260
      %272 = vst [vmem:[#allocation5] sm:$0xff] %v270
      %273 = vst [vmem:[#allocation5 + $0x8] sm:$0xff] %v271
    $region41: #{quant_linear.1} parent=1 // pred_fallthru
      _
    // Predicated region
    $region42: #{quant_linear.1} parent=1 // pred_check
      _
    $region43: #{quant_linear.1} parent=1 // pred_check_branch
      %275 = sbr.rel (0) target = $region45
    $region44: #{quant_linear.1} parent=1 // pred_region
      %s277 = ssub.s32 256, 256
      %278 = vsyncadd [#allocation6], %s277
      %s279 = sshll.u32 [#allocation5], 4
      %s280 = int_to_ptr.vmem [resolvable:$true] %s279
      %285 = dma.vmem_to_hbm [thread:$0]  %s280, 256, %s7, [#allocation6], 128, 128, 8
    $region45: #{quant_linear.1} parent=1 // pred_fallthru
      _
    // Predicated region
    $region46: #{quant_linear.1} parent=1 // pred_check
      _
    $region47: #{quant_linear.1} parent=1 // pred_check_branch
      %287 = sbr.rel (0) target = $region49
    $region48: #{quant_linear.1} parent=1 // pred_region
      %288 = dma.done [#allocation6], 256
    $region49: #{quant_linear.1} parent=1 // pred_fallthru
      _
    %289 = vsyncpa [#allocation6], 1

</llo_original>
